<compile_context>
chip_gen: v6e
topology: v6e:2x2x1
jax: 0.10.0
libtpu: 0.0.40
codegen_flags: <defaults>
</compile_context>

<pallas_src>
import functools

import jax
import jax.numpy as jnp
from jax.experimental import pallas as pl
from jax.experimental.pallas import tpu as pltpu


def _round_up(x, m):
    return ((x + m - 1) // m) * m


def _pick_tile(n, max_tile):
    """Largest multiple-of-8 tile <= max_tile; prefer one that divides n
    exactly so no padding (and no post-kernel slice copy) is needed."""
    if n % 8 == 0:
        d = min(max_tile, n)
        d -= d % 8
        while d >= 8:
            if n % d == 0:
                return d, n
            d -= 8
    tile = min(max_tile, _round_up(n, 8))
    return tile, _round_up(n, tile)


# ----------------------------- Pallas kernel ------------------------------ #
def _embeddings_kernel(ids_ref, tt_ref,                 # (TILE_T, 1) int32
                       table_ref,                       # (R_pad, H) fused table
                       gamma_ref, beta_ref,             # (1, H)
                       out_ref,                         # (TILE_T, H)
                       *, eps, hidden, seq_len,
                       off_pos, off_sent, off_ttype):
    tile_t = out_ref.shape[0]
    rows = table_ref.shape[0]

    ids = ids_ref[...]                                    # (T, 1)
    tt = tt_ref[...]                                      # (T, 1)

    # Position id = (global flat token index) % seq_len, generated in-kernel.
    base = pl.program_id(0) * tile_t
    row_idx = base + jax.lax.broadcasted_iota(jnp.int32, (tile_t, 1), 0)
    if (seq_len & (seq_len - 1)) == 0:                    # power-of-two fast path
        pos = jnp.bitwise_and(row_idx, seq_len - 1)
    else:
        pos = jax.lax.rem(row_idx, jnp.int32(seq_len))

    # Offsets into the fused [word | position | sentence_type | token_type]
    # table. The four index ranges are disjoint, so OR-ing the four one-hots
    # yields a (T, R) mask with exactly four ones per row; one MXU matmul then
    # returns the SUM of the four embeddings directly.
    idx_word = ids
    idx_pos = pos + off_pos
    idx_sent = tt + off_sent
    idx_ttype = jnp.where(tt > 0, off_ttype + 1, off_ttype)

    lane = jax.lax.broadcasted_iota(jnp.int32, (tile_t, rows), 1)
    onehot = ((lane == idx_word) | (lane == idx_pos)
              | (lane == idx_sent) | (lane == idx_ttype)).astype(jnp.float32)

    # One-hot entries are exactly 0.0/1.0, so HIGHEST keeps the f32 table rows
    # bit-accurate. (Precision.HIGH is a valid v5e speedup if the caller's
    # tolerance allows; kept HIGHEST here to match the reference to 1e-5.)
    x = jnp.dot(onehot, table_ref[...],
                preferred_element_type=jnp.float32,
                precision=jax.lax.Precision.HIGHEST)

    # BertLayerNorm over hidden, single pass: var = E[x^2] - mean^2.
    inv_h = 1.0 / hidden
    mean = jnp.sum(x, axis=-1, keepdims=True) * inv_h
    ex2 = jnp.sum(x * x, axis=-1, keepdims=True) * inv_h
    var = ex2 - mean * mean
    y = (x - mean) * jax.lax.rsqrt(var + eps)
    y = gamma_ref[...] * y + beta_ref[...]

    # TODO(synk): dropout omitted (eval mode / identity).
    out_ref[...] = y.astype(out_ref.dtype)


# -------------------------------- wrapper ---------------------------------- #
def bert_embeddings_plus(input_ids, token_type_ids, params, *, eps=1e-12,
                         tile_tokens=1024):
    """input_ids, token_type_ids: int32 [B, S]. Returns float32 [B, S, H]."""
    B, S = input_ids.shape
    H = params["word"].shape[1]
    N = B * S

    tile_t, n_pad = _pick_tile(N, tile_tokens)
    num_tiles = n_pad // tile_t

    # Fused table: [word | position | sentence_type | token_type], rows padded
    # to a multiple of 128 so a single wide-K matmul feeds the MXU.
    word = params["word"].astype(jnp.float32)
    posemb = params["position"].astype(jnp.float32)
    stype = params["sentence_type"].astype(jnp.float32)
    ttype = params["token_type"].astype(jnp.float32)
    V, P, ST, TT = word.shape[0], posemb.shape[0], stype.shape[0], ttype.shape[0]
    off_pos, off_sent, off_ttype = V, V + P, V + P + ST
    r_total = V + P + ST + TT
    r_pad = _round_up(r_total, 128)
    table = jnp.concatenate([word, posemb, stype, ttype], axis=0)
    if r_pad != r_total:
        table = jnp.pad(table, ((0, r_pad - r_total), (0, 0)))

    gamma = params["gamma"].reshape(1, H).astype(jnp.float32)
    beta = params["beta"].reshape(1, H).astype(jnp.float32)

    ids = input_ids.reshape(N).astype(jnp.int32)
    tt = token_type_ids.reshape(N).astype(jnp.int32)
    if n_pad != N:
        ids = jnp.pad(ids, (0, n_pad - N))
        tt = jnp.pad(tt, (0, n_pad - N))
    ids = ids.reshape(n_pad, 1)
    tt = tt.reshape(n_pad, 1)

    # VMEM budget derived from the chip: fused table (double-buffered by the
    # pipeline), id + output tiles (double-buffered), the (T, R) one-hot
    # intermediate, plus slack; capped at 80% of physical VMEM.
    try:
        vmem_cap = int(pltpu.get_tpu_info().vmem_capacity_bytes)
    except Exception:
        vmem_cap = 64 * 1024 * 1024            # conservative (v7x per-core)
    table_bytes = 4 * table.size
    needed = (2 * table_bytes
              + 2 * 4 * tile_t * H             # output tile, double-buffered
              + 4 * 4 * tile_t                 # ids/tt tiles, double-buffered
              + 4 * tile_t * r_pad             # one-hot intermediate
              + (4 << 20))                     # slack
    vmem_limit = int(min(max(needed, 16 << 20), 0.8 * vmem_cap))

    blk_row = lambda i: (i, 0)
    blk_const = lambda i: (0, 0)

    grid_spec = pltpu.PrefetchScalarGridSpec(
        num_scalar_prefetch=0,
        grid=(num_tiles,),
        in_specs=[
            pl.BlockSpec((tile_t, 1), blk_row),      # ids
            pl.BlockSpec((tile_t, 1), blk_row),      # token_type ids
            # TODO(synk): for real BERT vocabularies on v7x the word rows of
            # this table should stay in HBM (memory_space=pl.ANY) and be
            # row-gathered via make_async_copy from scalar-prefetched ids.
            pl.BlockSpec(table.shape, blk_const),    # fused table (VMEM-resident)
            pl.BlockSpec((1, H), blk_const),         # gamma
            pl.BlockSpec((1, H), blk_const),         # beta
        ],
        out_specs=pl.BlockSpec((tile_t, H), blk_row),
    )

    out = pl.pallas_call(
        functools.partial(_embeddings_kernel, eps=eps, hidden=H, seq_len=S,
                          off_pos=off_pos, off_sent=off_sent,
                          off_ttype=off_ttype),
        grid_spec=grid_spec,
        out_shape=jax.ShapeDtypeStruct((n_pad, H), jnp.float32),
        compiler_params=pltpu.CompilerParams(
            dimension_semantics=("parallel",),
            vmem_limit_bytes=vmem_limit),
    )(ids, tt, table, gamma, beta)

    if n_pad != N:
        out = out[:N]
    return out.reshape(B, S, H)


# --------------------------- pure-JAX reference ---------------------------- #
def bert_embeddings_plus_ref(input_ids, token_type_ids, params, *, eps=1e-12):
    B, S = input_ids.shape
    pos_ids = jnp.broadcast_to(jnp.arange(S, dtype=jnp.int32)[None, :], (B, S))
    x = (params["word"][input_ids]
         + params["position"][pos_ids]
         + params["token_type"][(token_type_ids > 0).astype(jnp.int32)]
         + params["sentence_type"][token_type_ids])
    u = jnp.mean(x, axis=-1, keepdims=True)
    s = jnp.mean((x - u) ** 2, axis=-1, keepdims=True)
    y = (x - u) / jnp.sqrt(s + eps)
    return params["gamma"] * y + params["beta"]


# --------------------------------- main ------------------------------------ #
if __name__ == "__main__":
    VOCAB = 64
    MAX_POS = 16
    TYPE_VOCAB = 2
    MAX_SENT_TYPE = 30
    HIDDEN = 128
    B, S = 2, 8

    key = jax.random.PRNGKey(0)
    k = jax.random.split(key, 7)
    params = {
        "word": 0.02 * jax.random.normal(k[0], (VOCAB, HIDDEN), jnp.float32),
        "position": 0.02 * jax.random.normal(k[1], (MAX_POS, HIDDEN), jnp.float32),
        "token_type": 0.02 * jax.random.normal(k[2], (TYPE_VOCAB, HIDDEN), jnp.float32),
        "sentence_type": 0.02 * jax.random.normal(k[3], (MAX_SENT_TYPE, HIDDEN), jnp.float32),
        "gamma": jnp.ones((HIDDEN,), jnp.float32),
        "beta": jnp.zeros((HIDDEN,), jnp.float32),
    }

    input_ids = jax.random.randint(k[4], (B, S), 0, VOCAB, dtype=jnp.int32)
    token_type_ids = jax.random.randint(k[5], (B, S), 0, MAX_SENT_TYPE, dtype=jnp.int32)

    out = bert_embeddings_plus(input_ids, token_type_ids, params)
    out = jax.block_until_ready(out)

    ref = bert_embeddings_plus_ref(input_ids, token_type_ids, params)
    assert out.shape == (B, S, HIDDEN)
    assert jnp.allclose(out, ref, atol=1e-5, rtol=1e-5), "mismatch vs JAX reference"

    print("KERNEL_OK")
</pallas_src>

<mosaic_0001>
module attributes {stable_mosaic.version = 11 : i64} {
  func.func @_embeddings_kernel(%arg0: i32, %arg1: memref<16x1xi32, #tpu.memory_space<vmem>>, %arg2: memref<16x1xi32, #tpu.memory_space<vmem>>, %arg3: memref<128x128xf32, #tpu.memory_space<vmem>>, %arg4: memref<1x128xf32, #tpu.memory_space<vmem>>, %arg5: memref<1x128xf32, #tpu.memory_space<vmem>>, %arg6: memref<16x128xf32, #tpu.memory_space<vmem>>) attributes {dimension_semantics = [#tpu.dimension_semantics<parallel>], iteration_bounds = array<i64: 1>, scalar_prefetch = 0 : i64, scratch_operands = 0 : i64, tpu.core_type = #tpu.core_type<tc>, window_params = [{transform_indices = @transform_0, window_bounds = array<i64: 16, 1>}, {transform_indices = @transform_1, window_bounds = array<i64: 16, 1>}, {pipeline_mode = #tpu.pipeline_mode<synchronous>, transform_indices = @transform_2, window_bounds = array<i64: 128, 128>}, {pipeline_mode = #tpu.pipeline_mode<synchronous>, transform_indices = @transform_3, window_bounds = array<i64: 1, 128>}, {pipeline_mode = #tpu.pipeline_mode<synchronous>, transform_indices = @transform_4, window_bounds = array<i64: 1, 128>}, {transform_indices = @transform_5, window_bounds = array<i64: 16, 128>}]} {
    %c0 = arith.constant 0 : index
    %c0_0 = arith.constant 0 : index
    %0 = vector.load %arg1[%c0, %c0_0] : memref<16x1xi32, #tpu.memory_space<vmem>>, vector<16x1xi32>
    %c0_1 = arith.constant 0 : index
    %c0_2 = arith.constant 0 : index
    %1 = vector.load %arg2[%c0_1, %c0_2] : memref<16x1xi32, #tpu.memory_space<vmem>>, vector<16x1xi32>
    %c16_i32 = arith.constant 16 : i32
    %2 = arith.muli %arg0, %c16_i32 : i32
    %3 = tpu.iota {dimensions = array<i32: 0>} : vector<16x1xi32>
    %4 = vector.broadcast %2 : i32 to vector<16x1xi32>
    %5 = arith.addi %4, %3 : vector<16x1xi32>
    %c7_i32 = arith.constant 7 : i32
    %6 = vector.broadcast %c7_i32 : i32 to vector<16x1xi32>
    %7 = arith.andi %5, %6 : vector<16x1xi32>
    %c64_i32 = arith.constant 64 : i32
    %8 = vector.broadcast %c64_i32 : i32 to vector<16x1xi32>
    %9 = arith.addi %7, %8 : vector<16x1xi32>
    %c80_i32 = arith.constant 80 : i32
    %10 = vector.broadcast %c80_i32 : i32 to vector<16x1xi32>
    %11 = arith.addi %1, %10 : vector<16x1xi32>
    %c0_i32 = arith.constant 0 : i32
    %12 = vector.broadcast %c0_i32 : i32 to vector<16x1xi32>
    %13 = arith.cmpi sgt, %1, %12 : vector<16x1xi32>
    %c111_i32 = arith.constant 111 : i32
    %c110_i32 = arith.constant 110 : i32
    %14 = vector.broadcast %c111_i32 : i32 to vector<16x1xi32>
    %15 = vector.broadcast %c110_i32 : i32 to vector<16x1xi32>
    %16 = arith.select %13, %14, %15 : vector<16x1xi1>, vector<16x1xi32>
    %17 = tpu.iota {dimensions = array<i32: 1>} : vector<16x128xi32>
    %18 = vector.broadcast %0 : vector<16x1xi32> to vector<16x128xi32>
    %19 = arith.cmpi eq, %17, %18 : vector<16x128xi32>
    %20 = vector.broadcast %9 : vector<16x1xi32> to vector<16x128xi32>
    %21 = arith.cmpi eq, %17, %20 : vector<16x128xi32>
    %22 = arith.ori %19, %21 : vector<16x128xi1>
    %23 = vector.broadcast %11 : vector<16x1xi32> to vector<16x128xi32>
    %24 = arith.cmpi eq, %17, %23 : vector<16x128xi32>
    %25 = arith.ori %22, %24 : vector<16x128xi1>
    %26 = vector.broadcast %16 : vector<16x1xi32> to vector<16x128xi32>
    %27 = arith.cmpi eq, %17, %26 : vector<16x128xi32>
    %28 = arith.ori %25, %27 : vector<16x128xi1>
    %29 = arith.extui %28 : vector<16x128xi1> to vector<16x128xi32>
    %30 = arith.sitofp %29 : vector<16x128xi32> to vector<16x128xf32>
    %c0_3 = arith.constant 0 : index
    %c0_4 = arith.constant 0 : index
    %31 = vector.load %arg3[%c0_3, %c0_4] : memref<128x128xf32, #tpu.memory_space<vmem>>, vector<128x128xf32>
    %cst = arith.constant dense<0.000000e+00> : vector<16x128xf32>
    %32 = tpu.matmul %30, %31, %cst {dimension_numbers = #tpu.dot_dimension_numbers<[1], [0], [0], [1], [0, 0, 1, 1], [], []>, precision = #tpu.contract_precision<fp32>} : vector<16x128xf32>, vector<128x128xf32>, vector<16x128xf32> -> vector<16x128xf32>
    %cst_5 = arith.constant dense<0.000000e+00> : vector<16xf32>
    %33 = vector.multi_reduction <add>, %32, %cst_5 [1] : vector<16x128xf32> to vector<16xf32>
    %34 = vector.shape_cast %33 : vector<16xf32> to vector<16x1xf32>
    %cst_6 = arith.constant 7.812500e-03 : f32
    %35 = vector.broadcast %cst_6 : f32 to vector<16x1xf32>
    %36 = arith.mulf %34, %35 : vector<16x1xf32>
    %37 = arith.mulf %32, %32 : vector<16x128xf32>
    %cst_7 = arith.constant dense<0.000000e+00> : vector<16xf32>
    %38 = vector.multi_reduction <add>, %37, %cst_7 [1] : vector<16x128xf32> to vector<16xf32>
    %39 = vector.shape_cast %38 : vector<16xf32> to vector<16x1xf32>
    %cst_8 = arith.constant 7.812500e-03 : f32
    %40 = vector.broadcast %cst_8 : f32 to vector<16x1xf32>
    %41 = arith.mulf %39, %40 : vector<16x1xf32>
    %42 = arith.mulf %36, %36 : vector<16x1xf32>
    %43 = arith.subf %41, %42 : vector<16x1xf32>
    %44 = vector.broadcast %36 : vector<16x1xf32> to vector<16x128xf32>
    %45 = arith.subf %32, %44 : vector<16x128xf32>
    %cst_9 = arith.constant 9.99999996E-13 : f32
    %46 = vector.broadcast %cst_9 : f32 to vector<16x1xf32>
    %47 = arith.addf %43, %46 : vector<16x1xf32>
    %48 = math.rsqrt %47 : vector<16x1xf32>
    %49 = vector.broadcast %48 : vector<16x1xf32> to vector<16x128xf32>
    %50 = arith.mulf %45, %49 : vector<16x128xf32>
    %c0_10 = arith.constant 0 : index
    %c0_11 = arith.constant 0 : index
    %51 = vector.load %arg4[%c0_10, %c0_11] : memref<1x128xf32, #tpu.memory_space<vmem>>, vector<1x128xf32>
    %52 = vector.broadcast %51 : vector<1x128xf32> to vector<16x128xf32>
    %53 = arith.mulf %52, %50 : vector<16x128xf32>
    %c0_12 = arith.constant 0 : index
    %c0_13 = arith.constant 0 : index
    %54 = vector.load %arg5[%c0_12, %c0_13] : memref<1x128xf32, #tpu.memory_space<vmem>>, vector<1x128xf32>
    %55 = vector.broadcast %54 : vector<1x128xf32> to vector<16x128xf32>
    %56 = arith.addf %53, %55 : vector<16x128xf32>
    %c0_14 = arith.constant 0 : index
    %c0_15 = arith.constant 0 : index
    %57 = vector.load %arg6[%c0_14, %c0_15] : memref<16x128xf32, #tpu.memory_space<vmem>>, vector<16x128xf32>
    tpu.vector_store %arg6[%c0_14, %c0_15], %56 {strides = array<i32>} : memref<16x128xf32, #tpu.memory_space<vmem>>, vector<16x128xf32>,
    return
  }
  func.func @transform_0(%arg0: i32) -> (i32, i32) {
    %c0_i32 = arith.constant 0 : i32
    %c0_i32_0 = arith.constant 0 : i32
    return %arg0, %c0_i32 : i32, i32
  }
  func.func @transform_1(%arg0: i32) -> (i32, i32) {
    %c0_i32 = arith.constant 0 : i32
    %c0_i32_0 = arith.constant 0 : i32
    return %arg0, %c0_i32 : i32, i32
  }
  func.func @transform_2(%arg0: i32) -> (i32, i32) {
    %c0_i32 = arith.constant 0 : i32
    %c0_i32_0 = arith.constant 0 : i32
    %c0_i32_1 = arith.constant 0 : i32
    return %c0_i32, %c0_i32_0 : i32, i32
  }
  func.func @transform_3(%arg0: i32) -> (i32, i32) {
    %c0_i32 = arith.constant 0 : i32
    %c0_i32_0 = arith.constant 0 : i32
    %c0_i32_1 = arith.constant 0 : i32
    return %c0_i32, %c0_i32_0 : i32, i32
  }
  func.func @transform_4(%arg0: i32) -> (i32, i32) {
    %c0_i32 = arith.constant 0 : i32
    %c0_i32_0 = arith.constant 0 : i32
    %c0_i32_1 = arith.constant 0 : i32
    return %c0_i32, %c0_i32_0 : i32, i32
  }
  func.func @transform_5(%arg0: i32) -> (i32, i32) {
    %c0_i32 = arith.constant 0 : i32
    %c0_i32_0 = arith.constant 0 : i32
    return %arg0, %c0_i32 : i32, i32
  }
}

</mosaic_0001>

<llo_original>
// kernel: tpu_custom_call.1
$region0: #{tpu_custom_call.1}
  #allocation0 [shape = 'u32[]', space=smem, size = 0x4, offset = 0x4, fixed_abs, tag = 'smem constant byte address 0x4 - core index']
  #allocation1 [shape = 'u32[144,128]{1,0:T(1,128)}', space=vmem, size = 0x12000, scoped, tag = 'internal scratch']
  %s0 = inlined_call_operand.vmem [shape: s32[16,1], index: 0, kind: input, shape index: {}]
  %s1 = inlined_call_operand.vmem [shape: s32[16,1], index: 1, kind: input, shape index: {}]
  %s2 = inlined_call_operand.hbm [shape: f32[128,128], index: 2, kind: input, shape index: {}]
  %s3 = inlined_call_operand.vmem [shape: f32[1,128], index: 3, kind: input, shape index: {}]
  %s4 = inlined_call_operand.vmem [shape: f32[1,128], index: 4, kind: input, shape index: {}]
  %s5 = inlined_call_operand.hbm [shape: f32[16,128], index: 5, kind: output, shape index: {}]
  %s6 = sld [smem:[#allocation0]]
  $region34: #{tpu_custom_call.1} parent=0
    _
  %s8 = ssub.s32 1, %s6
  %s9 = scalar_select 0, %s8, %s6
  $region1: #{tpu_custom_call.1} parent=0
    #allocation2 [shape = 'u8[65536]{0}', space=vmem, size = 0x10000, scoped, tag = 'input window, operand 2, single buffered']
    #allocation3 [shape = 's32[1]{0}', space=sflag, size = 0x4, scoped, tag = 'scoped memory for tpu_custom_call.1']
    #allocation4 [shape = 's32[1]{0}', space=sflag, size = 0x4, scoped, tag = 'scoped memory for tpu_custom_call.1']
    #allocation5 [shape = 'u8[8192]{0}', space=vmem, size = 0x2000, scoped, tag = 'output window, operand 0, single buffered']
    %10 = vsyncpa [#allocation3], 0
    %11 = vsyncpa [#allocation4], 0
    // Predicated region
    $region2: #{tpu_custom_call.1} parent=1 // pred_check
      _
    $region3: #{tpu_custom_call.1} parent=1 // pred_check_branch
      %13 = sbr.rel (0) target = $region5
    $region4: #{tpu_custom_call.1} parent=1 // pred_region
      _
    $region5: #{tpu_custom_call.1} parent=1 // pred_fallthru
      _
    // Predicated region
    $region6: #{tpu_custom_call.1} parent=1 // pred_check
      _
    $region7: #{tpu_custom_call.1} parent=1 // pred_check_branch
      %15 = sbr.rel (0) target = $region9
    $region8: #{tpu_custom_call.1} parent=1 // pred_region
      _
    $region9: #{tpu_custom_call.1} parent=1 // pred_fallthru
      _
    // Predicated region
    $region10: #{tpu_custom_call.1} parent=1 // pred_check
      _
    $region11: #{tpu_custom_call.1} parent=1 // pred_check_branch
      %17 = sbr.rel (0) target = $region13
    $region12: #{tpu_custom_call.1} parent=1 // pred_region
      %s19 = ssub.s32 2048, 2048
      %20 = vsyncadd [#allocation3], %s19
      %s21 = sshll.u32 [#allocation2], 4
      %s22 = int_to_ptr.vmem [resolvable:$true] %s21
      %27 = dma.hbm_to_vmem [thread:$0]  %s2, 2048, %s22, [#allocation3], 128, 128, 8
    $region13: #{tpu_custom_call.1} parent=1 // pred_fallthru
      _
    // Predicated region
    $region14: #{tpu_custom_call.1} parent=1 // pred_check
      _
    $region15: #{tpu_custom_call.1} parent=1 // pred_check_branch
      %29 = sbr.rel (0) target = $region17
    $region16: #{tpu_custom_call.1} parent=1 // pred_region
      _
    $region17: #{tpu_custom_call.1} parent=1 // pred_fallthru
      _
    // Predicated region
    $region18: #{tpu_custom_call.1} parent=1 // pred_check
      _
    $region19: #{tpu_custom_call.1} parent=1 // pred_check_branch
      %31 = sbr.rel (0) target = $region21
    $region20: #{tpu_custom_call.1} parent=1 // pred_region
      _
    $region21: #{tpu_custom_call.1} parent=1 // pred_fallthru
      _
    // Predicated region
    $region22: #{tpu_custom_call.1} parent=1 // pred_check
      _
    $region23: #{tpu_custom_call.1} parent=1 // pred_check_branch
      %33 = sbr.rel (0) target = $region25
    $region24: #{tpu_custom_call.1} parent=1 // pred_region
      %34 = dma.done [#allocation3], 2048
    $region25: #{tpu_custom_call.1} parent=1 // pred_fallthru
      _
    %v35 = vld [vmem:[%s0] sm:$0xff]
    %v36 = vld [vmem:[%s0 + $0x8] sm:$0xff]
    %v37 = vld [vmem:[%s1] sm:$0xff]
    %v38 = vld [vmem:[%s1 + $0x8] sm:$0xff]
    %s39 = smul.u32 0, 16
    %v40 = vlaneseq
    %v41 = vshrl.u32 %v40, 7
    %v42 = vadd.s32 %v41, 8
    %v43 = vstv %s39
    %v44 = vadd.s32 %v43, %v41
    %v45 = vadd.s32 %v43, %v42
    %v46 = vand.u32 %v44, 7
    %v47 = vand.u32 %v45, 7
    %v48 = vadd.s32 %v46, 64
    %v49 = vadd.s32 %v47, 64
    %v50 = vadd.s32 %v37, 80
    %v51 = vadd.s32 %v38, 80
    %vm52 = vcmp.gt.s32.totalorder %v37, 0
    %vm53 = vcmp.gt.s32.totalorder %v38, 0
    %v54 = vsel %vm52, 111, 110
    %v55 = vsel %vm53, 111, 110
    %v56 = vlaneseq
    %v57 = vand.u32 %v56, 127
    %58 = vset.pattern.permute.xlu0 0
    %59 = vperm.xlu0 %58, %v35
    %v60 = vpop.permute.xlu0 %59
    %61 = vset.pattern.permute.xlu0 0
    %62 = vperm.xlu0 %61, %v36
    %v63 = vpop.permute.xlu0 %62
    %vm64 = vcmp.eq.s32.totalorder %v57, %v60
    %vm65 = vcmp.eq.s32.totalorder %v57, %v63
    %vm66 = vcmp.eq.s32.totalorder %v57, %v48
    %vm67 = vcmp.eq.s32.totalorder %v57, %v49
    %vm68 = vmor %vm64, %vm66
    %vm69 = vmor %vm65, %vm67
    %70 = vset.pattern.permute.xlu0 0
    %71 = vperm.xlu0 %70, %v50
    %v72 = vpop.permute.xlu0 %71
    %73 = vset.pattern.permute.xlu0 0
    %74 = vperm.xlu0 %73, %v51
    %v75 = vpop.permute.xlu0 %74
    %vm76 = vcmp.eq.s32.totalorder %v57, %v72
    %vm77 = vcmp.eq.s32.totalorder %v57, %v75
    %vm78 = vmor %vm68, %vm76
    %vm79 = vmor %vm69, %vm77
    %80 = vset.pattern.permute.xlu0 0
    %81 = vperm.xlu0 %80, %v54
    %v82 = vpop.permute.xlu0 %81
    %83 = vset.pattern.permute.xlu0 0
    %84 = vperm.xlu0 %83, %v55
    %v85 = vpop.permute.xlu0 %84
    %vm86 = vcmp.eq.s32.totalorder %v57, %v82
    %vm87 = vcmp.eq.s32.totalorder %v57, %v85
    %vm88 = vmor %vm78, %vm86
    %vm89 = vmor %vm79, %vm87
    %v90 = vsel %vm88, 1, 0
    %v91 = vsel %vm89, 1, 0
    %v92 = vcvt.s32.f32 %v90
    %v93 = vcvt.s32.f32 %v91
    %v94 = vld [vmem:[#allocation2] sm:$0xff]
    %v95 = vld [vmem:[#allocation2 + $0x8] sm:$0xff]
    %v96 = vld [vmem:[#allocation2 + $0x10] sm:$0xff]
    %v97 = vld [vmem:[#allocation2 + $0x18] sm:$0xff]
    %v98 = vld [vmem:[#allocation2 + $0x20] sm:$0xff]
    %v99 = vld [vmem:[#allocation2 + $0x28] sm:$0xff]
    %v100 = vld [vmem:[#allocation2 + $0x30] sm:$0xff]
    %v101 = vld [vmem:[#allocation2 + $0x38] sm:$0xff]
    %v102 = vld [vmem:[#allocation2 + $0x40] sm:$0xff]
    %v103 = vld [vmem:[#allocation2 + $0x48] sm:$0xff]
    %v104 = vld [vmem:[#allocation2 + $0x50] sm:$0xff]
    %v105 = vld [vmem:[#allocation2 + $0x58] sm:$0xff]
    %v106 = vld [vmem:[#allocation2 + $0x60] sm:$0xff]
    %v107 = vld [vmem:[#allocation2 + $0x68] sm:$0xff]
    %v108 = vld [vmem:[#allocation2 + $0x70] sm:$0xff]
    %v109 = vld [vmem:[#allocation2 + $0x78] sm:$0xff]
    %110 = vmatprep.subr.mxu0 0.0
    %v111 = vand.u32 %v109, 4294901760
    %112 = vmatpush1.msra.mxu0 %v111
    %113 = vmatprep.subr.mxu0 0.0
    %v114 = vand.u32 %v108, 4294901760
    %115 = vmatpush1.msra.mxu0 %v114
    %116 = vmatprep.subr.mxu0 0.0
    %v117 = vand.u32 %v107, 4294901760
    %118 = vmatpush1.msra.mxu0 %v117
    %119 = vmatprep.subr.mxu0 0.0
    %v120 = vand.u32 %v106, 4294901760
    %121 = vmatpush1.msra.mxu0 %v120
    %122 = vmatprep.subr.mxu0 0.0
    %v123 = vand.u32 %v105, 4294901760
    %124 = vmatpush1.msra.mxu0 %v123
    %125 = vmatprep.subr.mxu0 0.0
    %v126 = vand.u32 %v104, 4294901760
    %127 = vmatpush1.msra.mxu0 %v126
    %128 = vmatprep.subr.mxu0 0.0
    %v129 = vand.u32 %v103, 4294901760
    %130 = vmatpush1.msra.mxu0 %v129
    %131 = vmatprep.subr.mxu0 0.0
    %v132 = vand.u32 %v102, 4294901760
    %133 = vmatpush1.msra.mxu0 %v132
    %134 = vmatprep.subr.mxu0 0.0
    %v135 = vand.u32 %v101, 4294901760
    %136 = vmatpush1.msra.mxu0 %v135
    %137 = vmatprep.subr.mxu0 0.0
    %v138 = vand.u32 %v100, 4294901760
    %139 = vmatpush1.msra.mxu0 %v138
    %140 = vmatprep.subr.mxu0 0.0
    %v141 = vand.u32 %v99, 4294901760
    %142 = vmatpush1.msra.mxu0 %v141
    %143 = vmatprep.subr.mxu0 0.0
    %v144 = vand.u32 %v98, 4294901760
    %145 = vmatpush1.msra.mxu0 %v144
    %146 = vmatprep.subr.mxu0 0.0
    %v147 = vand.u32 %v97, 4294901760
    %148 = vmatpush1.msra.mxu0 %v147
    %149 = vmatprep.subr.mxu0 0.0
    %v150 = vand.u32 %v96, 4294901760
    %151 = vmatpush1.msra.mxu0 %v150
    %152 = vmatprep.subr.mxu0 0.0
    %v153 = vand.u32 %v95, 4294901760
    %154 = vmatpush1.msra.mxu0 %v153
    %155 = vmatprep.subr.mxu0 0.0
    %v156 = vand.u32 %v94, 4294901760
    %157 = vmatpush1.msra.mxu0 %v156
    %158 = vmatprep.subr.mxu0 0.0
    %159 = vmatpush2.msra.mxu0 0.0
    %160 = vmatprep.subr.mxu0 0.0
    %161 = vmatpush2.msra.mxu0 0.0
    %162 = vmatprep.subr.mxu0 0.0
    %163 = vmatpush2.msra.mxu0 0.0
    %164 = vmatprep.subr.mxu0 0.0
    %165 = vmatpush2.msra.mxu0 0.0
    %166 = vmatprep.subr.mxu0 0.0
    %167 = vmatpush2.msra.mxu0 0.0
    %168 = vmatprep.subr.mxu0 0.0
    %169 = vmatpush2.msra.mxu0 0.0
    %170 = vmatprep.subr.mxu0 0.0
    %171 = vmatpush2.msra.mxu0 0.0
    %172 = vmatprep.subr.mxu0 0.0
    %173 = vmatpush2.msra.mxu0 0.0
    %174 = vmatprep.subr.mxu0 0.0
    %175 = vmatpush2.msra.mxu0 0.0
    %176 = vmatprep.subr.mxu0 0.0
    %177 = vmatpush2.msra.mxu0 0.0
    %178 = vmatprep.subr.mxu0 0.0
    %179 = vmatpush2.msra.mxu0 0.0
    %180 = vmatprep.subr.mxu0 0.0
    %181 = vmatpush2.msra.mxu0 0.0
    %182 = vmatprep.subr.mxu0 0.0
    %183 = vmatpush2.msra.mxu0 0.0
    %184 = vmatprep.subr.mxu0 0.0
    %185 = vmatpush2.msra.mxu0 0.0
    %186 = vmatprep.subr.mxu0 0.0
    %187 = vmatpush2.msra.mxu0 0.0
    %188 = vmatprep.subr.mxu0 0.0
    %189 = vmatpush2.msra.mxu0 0.0
    %190 = vmatprep.mubr.f32.mxu0 0.0
    %v191 = vand.u32 %v92, 4294901760
    %v192 = vsub.f32 %v92, %v191
    %v193 = vand.u32 %v192, 4294901760
    %v194 = vsub.f32 %v192, %v193
    %v195 = vand.u32 %v194, 4294901760
    %196 = vmatmul.mubr.f32.gmra.mxu0 %v195
    %v197 = vpop.f32.mrf.mxu0
    %v198 = vadd.f32 0.0, %v197
    %v199 = vpop.f32.mrf.mxu0
    %200 = vmatprep.mubr.f32.mxu0 0.0
    %v201 = vand.u32 %v93, 4294901760
    %v202 = vsub.f32 %v93, %v201
    %v203 = vand.u32 %v202, 4294901760
    %v204 = vsub.f32 %v202, %v203
    %v205 = vand.u32 %v204, 4294901760
    %206 = vmatmul.mubr.f32.gmra.mxu0 %v205
    %v207 = vpop.f32.mrf.mxu0
    %v208 = vadd.f32 0.0, %v207
    %v209 = vpop.f32.mrf.mxu0
    %210 = vdwg.mxu0
    %211 = vmatprep.subr.mxu0 0.0
    %v212 = vand.u32 %v109, 4294901760
    %v213 = vsub.f32 %v109, %v212
    %v214 = vand.u32 %v213, 4294901760
    %v215 = vsub.f32 %v213, %v214
    %v216 = vand.u32 %v215, 4294901760
    %217 = vmatpush1.msra.mxu0 %v216
    %218 = vmatprep.subr.mxu0 0.0
    %v219 = vand.u32 %v108, 4294901760
    %v220 = vsub.f32 %v108, %v219
    %v221 = vand.u32 %v220, 4294901760
    %v222 = vsub.f32 %v220, %v221
    %v223 = vand.u32 %v222, 4294901760
    %224 = vmatpush1.msra.mxu0 %v223
    %225 = vmatprep.subr.mxu0 0.0
    %v226 = vand.u32 %v107, 4294901760
    %v227 = vsub.f32 %v107, %v226
    %v228 = vand.u32 %v227, 4294901760
    %v229 = vsub.f32 %v227, %v228
    %v230 = vand.u32 %v229, 4294901760
    %231 = vmatpush1.msra.mxu0 %v230
    %232 = vmatprep.subr.mxu0 0.0
    %v233 = vand.u32 %v106, 4294901760
    %v234 = vsub.f32 %v106, %v233
    %v235 = vand.u32 %v234, 4294901760
    %v236 = vsub.f32 %v234, %v235
    %v237 = vand.u32 %v236, 4294901760
    %238 = vmatpush1.msra.mxu0 %v237
    %239 = vmatprep.subr.mxu0 0.0
    %v240 = vand.u32 %v105, 4294901760
    %v241 = vsub.f32 %v105, %v240
    %v242 = vand.u32 %v241, 4294901760
    %v243 = vsub.f32 %v241, %v242
    %v244 = vand.u32 %v243, 4294901760
    %245 = vmatpush1.msra.mxu0 %v244
    %246 = vmatprep.subr.mxu0 0.0
    %v247 = vand.u32 %v104, 4294901760
    %v248 = vsub.f32 %v104, %v247
    %v249 = vand.u32 %v248, 4294901760
    %v250 = vsub.f32 %v248, %v249
    %v251 = vand.u32 %v250, 4294901760
    %252 = vmatpush1.msra.mxu0 %v251
    %253 = vmatprep.subr.mxu0 0.0
    %v254 = vand.u32 %v103, 4294901760
    %v255 = vsub.f32 %v103, %v254
    %v256 = vand.u32 %v255, 4294901760
    %v257 = vsub.f32 %v255, %v256
    %v258 = vand.u32 %v257, 4294901760
    %259 = vmatpush1.msra.mxu0 %v258
    %260 = vmatprep.subr.mxu0 0.0
    %v261 = vand.u32 %v102, 4294901760
    %v262 = vsub.f32 %v102, %v261
    %v263 = vand.u32 %v262, 4294901760
    %v264 = vsub.f32 %v262, %v263
    %v265 = vand.u32 %v264, 4294901760
    %266 = vmatpush1.msra.mxu0 %v265
    %267 = vmatprep.subr.mxu0 0.0
    %v268 = vand.u32 %v101, 4294901760
    %v269 = vsub.f32 %v101, %v268
    %v270 = vand.u32 %v269, 4294901760
    %v271 = vsub.f32 %v269, %v270
    %v272 = vand.u32 %v271, 4294901760
    %273 = vmatpush1.msra.mxu0 %v272
    %274 = vmatprep.subr.mxu0 0.0
    %v275 = vand.u32 %v100, 4294901760
    %v276 = vsub.f32 %v100, %v275
    %v277 = vand.u32 %v276, 4294901760
    %v278 = vsub.f32 %v276, %v277
    %v279 = vand.u32 %v278, 4294901760
    %280 = vmatpush1.msra.mxu0 %v279
    %281 = vmatprep.subr.mxu0 0.0
    %v282 = vand.u32 %v99, 4294901760
    %v283 = vsub.f32 %v99, %v282
    %v284 = vand.u32 %v283, 4294901760
    %v285 = vsub.f32 %v283, %v284
    %v286 = vand.u32 %v285, 4294901760
    %287 = vmatpush1.msra.mxu0 %v286
    %288 = vmatprep.subr.mxu0 0.0
    %v289 = vand.u32 %v98, 4294901760
    %v290 = vsub.f32 %v98, %v289
    %v291 = vand.u32 %v290, 4294901760
    %v292 = vsub.f32 %v290, %v291
    %v293 = vand.u32 %v292, 4294901760
    %294 = vmatpush1.msra.mxu0 %v293
    %295 = vmatprep.subr.mxu0 0.0
    %v296 = vand.u32 %v97, 4294901760
    %v297 = vsub.f32 %v97, %v296
    %v298 = vand.u32 %v297, 4294901760
    %v299 = vsub.f32 %v297, %v298
    %v300 = vand.u32 %v299, 4294901760
    %301 = vmatpush1.msra.mxu0 %v300
    %302 = vmatprep.subr.mxu0 0.0
    %v303 = vand.u32 %v96, 4294901760
    %v304 = vsub.f32 %v96, %v303
    %v305 = vand.u32 %v304, 4294901760
    %v306 = vsub.f32 %v304, %v305
    %v307 = vand.u32 %v306, 4294901760
    %308 = vmatpush1.msra.mxu0 %v307
    %309 = vmatprep.subr.mxu0 0.0
    %v310 = vand.u32 %v95, 4294901760
    %v311 = vsub.f32 %v95, %v310
    %v312 = vand.u32 %v311, 4294901760
    %v313 = vsub.f32 %v311, %v312
    %v314 = vand.u32 %v313, 4294901760
    %315 = vmatpush1.msra.mxu0 %v314
    %316 = vmatprep.subr.mxu0 0.0
    %v317 = vand.u32 %v94, 4294901760
    %v318 = vsub.f32 %v94, %v317
    %v319 = vand.u32 %v318, 4294901760
    %v320 = vsub.f32 %v318, %v319
    %v321 = vand.u32 %v320, 4294901760
    %322 = vmatpush1.msra.mxu0 %v321
    %323 = vmatprep.subr.mxu0 0.0
    %324 = vmatpush2.msra.mxu0 0.0
    %325 = vmatprep.subr.mxu0 0.0
    %326 = vmatpush2.msra.mxu0 0.0
    %327 = vmatprep.subr.mxu0 0.0
    %328 = vmatpush2.msra.mxu0 0.0
    %329 = vmatprep.subr.mxu0 0.0
    %330 = vmatpush2.msra.mxu0 0.0
    %331 = vmatprep.subr.mxu0 0.0
    %332 = vmatpush2.msra.mxu0 0.0
    %333 = vmatprep.subr.mxu0 0.0
    %334 = vmatpush2.msra.mxu0 0.0
    %335 = vmatprep.subr.mxu0 0.0
    %336 = vmatpush2.msra.mxu0 0.0
    %337 = vmatprep.subr.mxu0 0.0
    %338 = vmatpush2.msra.mxu0 0.0
    %339 = vmatprep.subr.mxu0 0.0
    %340 = vmatpush2.msra.mxu0 0.0
    %341 = vmatprep.subr.mxu0 0.0
    %342 = vmatpush2.msra.mxu0 0.0
    %343 = vmatprep.subr.mxu0 0.0
    %344 = vmatpush2.msra.mxu0 0.0
    %345 = vmatprep.subr.mxu0 0.0
    %346 = vmatpush2.msra.mxu0 0.0
    %347 = vmatprep.subr.mxu0 0.0
    %348 = vmatpush2.msra.mxu0 0.0
    %349 = vmatprep.subr.mxu0 0.0
    %350 = vmatpush2.msra.mxu0 0.0
    %351 = vmatprep.subr.mxu0 0.0
    %352 = vmatpush2.msra.mxu0 0.0
    %353 = vmatprep.subr.mxu0 0.0
    %354 = vmatpush2.msra.mxu0 0.0
    %355 = vmatprep.mubr.f32.mxu0 0.0
    %v356 = vand.u32 %v92, 4294901760
    %357 = vmatmul.mubr.f32.gmra.mxu0 %v356
    %v358 = vpop.f32.mrf.mxu0
    %v359 = vadd.f32 %v198, %v358
    %v360 = vpop.f32.mrf.mxu0
    %361 = vmatprep.mubr.f32.mxu0 0.0
    %v362 = vand.u32 %v93, 4294901760
    %363 = vmatmul.mubr.f32.gmra.mxu0 %v362
    %v364 = vpop.f32.mrf.mxu0
    %v365 = vadd.f32 %v208, %v364
    %v366 = vpop.f32.mrf.mxu0
    %367 = vdwg.mxu0
    %368 = vmatprep.subr.mxu0 0.0
    %v369 = vand.u32 %v109, 4294901760
    %v370 = vsub.f32 %v109, %v369
    %371 = vmatpush1.msra.mxu0 %v370
    %372 = vmatprep.subr.mxu0 0.0
    %v373 = vand.u32 %v108, 4294901760
    %v374 = vsub.f32 %v108, %v373
    %375 = vmatpush1.msra.mxu0 %v374
    %376 = vmatprep.subr.mxu0 0.0
    %v377 = vand.u32 %v107, 4294901760
    %v378 = vsub.f32 %v107, %v377
    %379 = vmatpush1.msra.mxu0 %v378
    %380 = vmatprep.subr.mxu0 0.0
    %v381 = vand.u32 %v106, 4294901760
    %v382 = vsub.f32 %v106, %v381
    %383 = vmatpush1.msra.mxu0 %v382
    %384 = vmatprep.subr.mxu0 0.0
    %v385 = vand.u32 %v105, 4294901760
    %v386 = vsub.f32 %v105, %v385
    %387 = vmatpush1.msra.mxu0 %v386
    %388 = vmatprep.subr.mxu0 0.0
    %v389 = vand.u32 %v104, 4294901760
    %v390 = vsub.f32 %v104, %v389
    %391 = vmatpush1.msra.mxu0 %v390
    %392 = vmatprep.subr.mxu0 0.0
    %v393 = vand.u32 %v103, 4294901760
    %v394 = vsub.f32 %v103, %v393
    %395 = vmatpush1.msra.mxu0 %v394
    %396 = vmatprep.subr.mxu0 0.0
    %v397 = vand.u32 %v102, 4294901760
    %v398 = vsub.f32 %v102, %v397
    %399 = vmatpush1.msra.mxu0 %v398
    %400 = vmatprep.subr.mxu0 0.0
    %v401 = vand.u32 %v101, 4294901760
    %v402 = vsub.f32 %v101, %v401
    %403 = vmatpush1.msra.mxu0 %v402
    %404 = vmatprep.subr.mxu0 0.0
    %v405 = vand.u32 %v100, 4294901760
    %v406 = vsub.f32 %v100, %v405
    %407 = vmatpush1.msra.mxu0 %v406
    %408 = vmatprep.subr.mxu0 0.0
    %v409 = vand.u32 %v99, 4294901760
    %v410 = vsub.f32 %v99, %v409
    %411 = vmatpush1.msra.mxu0 %v410
    %412 = vmatprep.subr.mxu0 0.0
    %v413 = vand.u32 %v98, 4294901760
    %v414 = vsub.f32 %v98, %v413
    %415 = vmatpush1.msra.mxu0 %v414
    %416 = vmatprep.subr.mxu0 0.0
    %v417 = vand.u32 %v97, 4294901760
    %v418 = vsub.f32 %v97, %v417
    %419 = vmatpush1.msra.mxu0 %v418
    %420 = vmatprep.subr.mxu0 0.0
    %v421 = vand.u32 %v96, 4294901760
    %v422 = vsub.f32 %v96, %v421
    %423 = vmatpush1.msra.mxu0 %v422
    %424 = vmatprep.subr.mxu0 0.0
    %v425 = vand.u32 %v95, 4294901760
    %v426 = vsub.f32 %v95, %v425
    %427 = vmatpush1.msra.mxu0 %v426
    %428 = vmatprep.subr.mxu0 0.0
    %v429 = vand.u32 %v94, 4294901760
    %v430 = vsub.f32 %v94, %v429
    %431 = vmatpush1.msra.mxu0 %v430
    %432 = vmatprep.subr.mxu0 0.0
    %433 = vmatpush2.msra.mxu0 0.0
    %434 = vmatprep.subr.mxu0 0.0
    %435 = vmatpush2.msra.mxu0 0.0
    %436 = vmatprep.subr.mxu0 0.0
    %437 = vmatpush2.msra.mxu0 0.0
    %438 = vmatprep.subr.mxu0 0.0
    %439 = vmatpush2.msra.mxu0 0.0
    %440 = vmatprep.subr.mxu0 0.0
    %441 = vmatpush2.msra.mxu0 0.0
    %442 = vmatprep.subr.mxu0 0.0
    %443 = vmatpush2.msra.mxu0 0.0
    %444 = vmatprep.subr.mxu0 0.0
    %445 = vmatpush2.msra.mxu0 0.0
    %446 = vmatprep.subr.mxu0 0.0
    %447 = vmatpush2.msra.mxu0 0.0
    %448 = vmatprep.subr.mxu0 0.0
    %449 = vmatpush2.msra.mxu0 0.0
    %450 = vmatprep.subr.mxu0 0.0
    %451 = vmatpush2.msra.mxu0 0.0
    %452 = vmatprep.subr.mxu0 0.0
    %453 = vmatpush2.msra.mxu0 0.0
    %454 = vmatprep.subr.mxu0 0.0
    %455 = vmatpush2.msra.mxu0 0.0
    %456 = vmatprep.subr.mxu0 0.0
    %457 = vmatpush2.msra.mxu0 0.0
    %458 = vmatprep.subr.mxu0 0.0
    %459 = vmatpush2.msra.mxu0 0.0
    %460 = vmatprep.subr.mxu0 0.0
    %461 = vmatpush2.msra.mxu0 0.0
    %462 = vmatprep.subr.mxu0 0.0
    %463 = vmatpush2.msra.mxu0 0.0
    %464 = vmatprep.mubr.f32.mxu0 0.0
    %v465 = vand.u32 %v92, 4294901760
    %v466 = vsub.f32 %v92, %v465
    %467 = vmatmul.mubr.f32.gmra.mxu0 %v466
    %v468 = vpop.f32.mrf.mxu0
    %v469 = vadd.f32 %v359, %v468
    %v470 = vpop.f32.mrf.mxu0
    %471 = vmatprep.mubr.f32.mxu0 0.0
    %v472 = vand.u32 %v93, 4294901760
    %v473 = vsub.f32 %v93, %v472
    %474 = vmatmul.mubr.f32.gmra.mxu0 %v473
    %v475 = vpop.f32.mrf.mxu0
    %v476 = vadd.f32 %v365, %v475
    %v477 = vpop.f32.mrf.mxu0
    %478 = vdwg.mxu0
    %479 = vmatprep.subr.mxu0 0.0
    %v480 = vand.u32 %v109, 4294901760
    %481 = vmatpush1.msra.mxu0 %v480
    %482 = vmatprep.subr.mxu0 0.0
    %v483 = vand.u32 %v108, 4294901760
    %484 = vmatpush1.msra.mxu0 %v483
    %485 = vmatprep.subr.mxu0 0.0
    %v486 = vand.u32 %v107, 4294901760
    %487 = vmatpush1.msra.mxu0 %v486
    %488 = vmatprep.subr.mxu0 0.0
    %v489 = vand.u32 %v106, 4294901760
    %490 = vmatpush1.msra.mxu0 %v489
    %491 = vmatprep.subr.mxu0 0.0
    %v492 = vand.u32 %v105, 4294901760
    %493 = vmatpush1.msra.mxu0 %v492
    %494 = vmatprep.subr.mxu0 0.0
    %v495 = vand.u32 %v104, 4294901760
    %496 = vmatpush1.msra.mxu0 %v495
    %497 = vmatprep.subr.mxu0 0.0
    %v498 = vand.u32 %v103, 4294901760
    %499 = vmatpush1.msra.mxu0 %v498
    %500 = vmatprep.subr.mxu0 0.0
    %v501 = vand.u32 %v102, 4294901760
    %502 = vmatpush1.msra.mxu0 %v501
    %503 = vmatprep.subr.mxu0 0.0
    %v504 = vand.u32 %v101, 4294901760
    %505 = vmatpush1.msra.mxu0 %v504
    %506 = vmatprep.subr.mxu0 0.0
    %v507 = vand.u32 %v100, 4294901760
    %508 = vmatpush1.msra.mxu0 %v507
    %509 = vmatprep.subr.mxu0 0.0
    %v510 = vand.u32 %v99, 4294901760
    %511 = vmatpush1.msra.mxu0 %v510
    %512 = vmatprep.subr.mxu0 0.0
    %v513 = vand.u32 %v98, 4294901760
    %514 = vmatpush1.msra.mxu0 %v513
    %515 = vmatprep.subr.mxu0 0.0
    %v516 = vand.u32 %v97, 4294901760
    %517 = vmatpush1.msra.mxu0 %v516
    %518 = vmatprep.subr.mxu0 0.0
    %v519 = vand.u32 %v96, 4294901760
    %520 = vmatpush1.msra.mxu0 %v519
    %521 = vmatprep.subr.mxu0 0.0
    %v522 = vand.u32 %v95, 4294901760
    %523 = vmatpush1.msra.mxu0 %v522
    %524 = vmatprep.subr.mxu0 0.0
    %v525 = vand.u32 %v94, 4294901760
    %526 = vmatpush1.msra.mxu0 %v525
    %527 = vmatprep.subr.mxu0 0.0
    %528 = vmatpush2.msra.mxu0 0.0
    %529 = vmatprep.subr.mxu0 0.0
    %530 = vmatpush2.msra.mxu0 0.0
    %531 = vmatprep.subr.mxu0 0.0
    %532 = vmatpush2.msra.mxu0 0.0
    %533 = vmatprep.subr.mxu0 0.0
    %534 = vmatpush2.msra.mxu0 0.0
    %535 = vmatprep.subr.mxu0 0.0
    %536 = vmatpush2.msra.mxu0 0.0
    %537 = vmatprep.subr.mxu0 0.0
    %538 = vmatpush2.msra.mxu0 0.0
    %539 = vmatprep.subr.mxu0 0.0
    %540 = vmatpush2.msra.mxu0 0.0
    %541 = vmatprep.subr.mxu0 0.0
    %542 = vmatpush2.msra.mxu0 0.0
    %543 = vmatprep.subr.mxu0 0.0
    %544 = vmatpush2.msra.mxu0 0.0
    %545 = vmatprep.subr.mxu0 0.0
    %546 = vmatpush2.msra.mxu0 0.0
    %547 = vmatprep.subr.mxu0 0.0
    %548 = vmatpush2.msra.mxu0 0.0
    %549 = vmatprep.subr.mxu0 0.0
    %550 = vmatpush2.msra.mxu0 0.0
    %551 = vmatprep.subr.mxu0 0.0
    %552 = vmatpush2.msra.mxu0 0.0
    %553 = vmatprep.subr.mxu0 0.0
    %554 = vmatpush2.msra.mxu0 0.0
    %555 = vmatprep.subr.mxu0 0.0
    %556 = vmatpush2.msra.mxu0 0.0
    %557 = vmatprep.subr.mxu0 0.0
    %558 = vmatpush2.msra.mxu0 0.0
    %559 = vmatprep.mubr.f32.mxu0 0.0
    %v560 = vand.u32 %v92, 4294901760
    %v561 = vsub.f32 %v92, %v560
    %v562 = vand.u32 %v561, 4294901760
    %563 = vmatmul.mubr.f32.gmra.mxu0 %v562
    %v564 = vpop.f32.mrf.mxu0
    %v565 = vadd.f32 %v469, %v564
    %v566 = vpop.f32.mrf.mxu0
    %567 = vmatprep.mubr.f32.mxu0 0.0
    %v568 = vand.u32 %v93, 4294901760
    %v569 = vsub.f32 %v93, %v568
    %v570 = vand.u32 %v569, 4294901760
    %571 = vmatmul.mubr.f32.gmra.mxu0 %v570
    %v572 = vpop.f32.mrf.mxu0
    %v573 = vadd.f32 %v476, %v572
    %v574 = vpop.f32.mrf.mxu0
    %575 = vdwg.mxu0
    %576 = vmatprep.subr.mxu0 0.0
    %v577 = vand.u32 %v109, 4294901760
    %v578 = vsub.f32 %v109, %v577
    %v579 = vand.u32 %v578, 4294901760
    %580 = vmatpush1.msra.mxu0 %v579
    %581 = vmatprep.subr.mxu0 0.0
    %v582 = vand.u32 %v108, 4294901760
    %v583 = vsub.f32 %v108, %v582
    %v584 = vand.u32 %v583, 4294901760
    %585 = vmatpush1.msra.mxu0 %v584
    %586 = vmatprep.subr.mxu0 0.0
    %v587 = vand.u32 %v107, 4294901760
    %v588 = vsub.f32 %v107, %v587
    %v589 = vand.u32 %v588, 4294901760
    %590 = vmatpush1.msra.mxu0 %v589
    %591 = vmatprep.subr.mxu0 0.0
    %v592 = vand.u32 %v106, 4294901760
    %v593 = vsub.f32 %v106, %v592
    %v594 = vand.u32 %v593, 4294901760
    %595 = vmatpush1.msra.mxu0 %v594
    %596 = vmatprep.subr.mxu0 0.0
    %v597 = vand.u32 %v105, 4294901760
    %v598 = vsub.f32 %v105, %v597
    %v599 = vand.u32 %v598, 4294901760
    %600 = vmatpush1.msra.mxu0 %v599
    %601 = vmatprep.subr.mxu0 0.0
    %v602 = vand.u32 %v104, 4294901760
    %v603 = vsub.f32 %v104, %v602
    %v604 = vand.u32 %v603, 4294901760
    %605 = vmatpush1.msra.mxu0 %v604
    %606 = vmatprep.subr.mxu0 0.0
    %v607 = vand.u32 %v103, 4294901760
    %v608 = vsub.f32 %v103, %v607
    %v609 = vand.u32 %v608, 4294901760
    %610 = vmatpush1.msra.mxu0 %v609
    %611 = vmatprep.subr.mxu0 0.0
    %v612 = vand.u32 %v102, 4294901760
    %v613 = vsub.f32 %v102, %v612
    %v614 = vand.u32 %v613, 4294901760
    %615 = vmatpush1.msra.mxu0 %v614
    %616 = vmatprep.subr.mxu0 0.0
    %v617 = vand.u32 %v101, 4294901760
    %v618 = vsub.f32 %v101, %v617
    %v619 = vand.u32 %v618, 4294901760
    %620 = vmatpush1.msra.mxu0 %v619
    %621 = vmatprep.subr.mxu0 0.0
    %v622 = vand.u32 %v100, 4294901760
    %v623 = vsub.f32 %v100, %v622
    %v624 = vand.u32 %v623, 4294901760
    %625 = vmatpush1.msra.mxu0 %v624
    %626 = vmatprep.subr.mxu0 0.0
    %v627 = vand.u32 %v99, 4294901760
    %v628 = vsub.f32 %v99, %v627
    %v629 = vand.u32 %v628, 4294901760
    %630 = vmatpush1.msra.mxu0 %v629
    %631 = vmatprep.subr.mxu0 0.0
    %v632 = vand.u32 %v98, 4294901760
    %v633 = vsub.f32 %v98, %v632
    %v634 = vand.u32 %v633, 4294901760
    %635 = vmatpush1.msra.mxu0 %v634
    %636 = vmatprep.subr.mxu0 0.0
    %v637 = vand.u32 %v97, 4294901760
    %v638 = vsub.f32 %v97, %v637
    %v639 = vand.u32 %v638, 4294901760
    %640 = vmatpush1.msra.mxu0 %v639
    %641 = vmatprep.subr.mxu0 0.0
    %v642 = vand.u32 %v96, 4294901760
    %v643 = vsub.f32 %v96, %v642
    %v644 = vand.u32 %v643, 4294901760
    %645 = vmatpush1.msra.mxu0 %v644
    %646 = vmatprep.subr.mxu0 0.0
    %v647 = vand.u32 %v95, 4294901760
    %v648 = vsub.f32 %v95, %v647
    %v649 = vand.u32 %v648, 4294901760
    %650 = vmatpush1.msra.mxu0 %v649
    %651 = vmatprep.subr.mxu0 0.0
    %v652 = vand.u32 %v94, 4294901760
    %v653 = vsub.f32 %v94, %v652
    %v654 = vand.u32 %v653, 4294901760
    %655 = vmatpush1.msra.mxu0 %v654
    %656 = vmatprep.subr.mxu0 0.0
    %657 = vmatpush2.msra.mxu0 0.0
    %658 = vmatprep.subr.mxu0 0.0
    %659 = vmatpush2.msra.mxu0 0.0
    %660 = vmatprep.subr.mxu0 0.0
    %661 = vmatpush2.msra.mxu0 0.0
    %662 = vmatprep.subr.mxu0 0.0
    %663 = vmatpush2.msra.mxu0 0.0
    %664 = vmatprep.subr.mxu0 0.0
    %665 = vmatpush2.msra.mxu0 0.0
    %666 = vmatprep.subr.mxu0 0.0
    %667 = vmatpush2.msra.mxu0 0.0
    %668 = vmatprep.subr.mxu0 0.0
    %669 = vmatpush2.msra.mxu0 0.0
    %670 = vmatprep.subr.mxu0 0.0
    %671 = vmatpush2.msra.mxu0 0.0
    %672 = vmatprep.subr.mxu0 0.0
    %673 = vmatpush2.msra.mxu0 0.0
    %674 = vmatprep.subr.mxu0 0.0
    %675 = vmatpush2.msra.mxu0 0.0
    %676 = vmatprep.subr.mxu0 0.0
    %677 = vmatpush2.msra.mxu0 0.0
    %678 = vmatprep.subr.mxu0 0.0
    %679 = vmatpush2.msra.mxu0 0.0
    %680 = vmatprep.subr.mxu0 0.0
    %681 = vmatpush2.msra.mxu0 0.0
    %682 = vmatprep.subr.mxu0 0.0
    %683 = vmatpush2.msra.mxu0 0.0
    %684 = vmatprep.subr.mxu0 0.0
    %685 = vmatpush2.msra.mxu0 0.0
    %686 = vmatprep.subr.mxu0 0.0
    %687 = vmatpush2.msra.mxu0 0.0
    %688 = vmatprep.mubr.f32.mxu0 0.0
    %v689 = vand.u32 %v92, 4294901760
    %690 = vmatmul.mubr.f32.gmra.mxu0 %v689
    %v691 = vpop.f32.mrf.mxu0
    %v692 = vadd.f32 %v565, %v691
    %v693 = vpop.f32.mrf.mxu0
    %694 = vmatprep.mubr.f32.mxu0 0.0
    %v695 = vand.u32 %v93, 4294901760
    %696 = vmatmul.mubr.f32.gmra.mxu0 %v695
    %v697 = vpop.f32.mrf.mxu0
    %v698 = vadd.f32 %v573, %v697
    %v699 = vpop.f32.mrf.mxu0
    %700 = vdwg.mxu0
    %701 = vmatprep.subr.mxu0 0.0
    %v702 = vand.u32 %v109, 4294901760
    %703 = vmatpush1.msra.mxu0 %v702
    %704 = vmatprep.subr.mxu0 0.0
    %v705 = vand.u32 %v108, 4294901760
    %706 = vmatpush1.msra.mxu0 %v705
    %707 = vmatprep.subr.mxu0 0.0
    %v708 = vand.u32 %v107, 4294901760
    %709 = vmatpush1.msra.mxu0 %v708
    %710 = vmatprep.subr.mxu0 0.0
    %v711 = vand.u32 %v106, 4294901760
    %712 = vmatpush1.msra.mxu0 %v711
    %713 = vmatprep.subr.mxu0 0.0
    %v714 = vand.u32 %v105, 4294901760
    %715 = vmatpush1.msra.mxu0 %v714
    %716 = vmatprep.subr.mxu0 0.0
    %v717 = vand.u32 %v104, 4294901760
    %718 = vmatpush1.msra.mxu0 %v717
    %719 = vmatprep.subr.mxu0 0.0
    %v720 = vand.u32 %v103, 4294901760
    %721 = vmatpush1.msra.mxu0 %v720
    %722 = vmatprep.subr.mxu0 0.0
    %v723 = vand.u32 %v102, 4294901760
    %724 = vmatpush1.msra.mxu0 %v723
    %725 = vmatprep.subr.mxu0 0.0
    %v726 = vand.u32 %v101, 4294901760
    %727 = vmatpush1.msra.mxu0 %v726
    %728 = vmatprep.subr.mxu0 0.0
    %v729 = vand.u32 %v100, 4294901760
    %730 = vmatpush1.msra.mxu0 %v729
    %731 = vmatprep.subr.mxu0 0.0
    %v732 = vand.u32 %v99, 4294901760
    %733 = vmatpush1.msra.mxu0 %v732
    %734 = vmatprep.subr.mxu0 0.0
    %v735 = vand.u32 %v98, 4294901760
    %736 = vmatpush1.msra.mxu0 %v735
    %737 = vmatprep.subr.mxu0 0.0
    %v738 = vand.u32 %v97, 4294901760
    %739 = vmatpush1.msra.mxu0 %v738
    %740 = vmatprep.subr.mxu0 0.0
    %v741 = vand.u32 %v96, 4294901760
    %742 = vmatpush1.msra.mxu0 %v741
    %743 = vmatprep.subr.mxu0 0.0
    %v744 = vand.u32 %v95, 4294901760
    %745 = vmatpush1.msra.mxu0 %v744
    %746 = vmatprep.subr.mxu0 0.0
    %v747 = vand.u32 %v94, 4294901760
    %748 = vmatpush1.msra.mxu0 %v747
    %749 = vmatprep.subr.mxu0 0.0
    %750 = vmatpush2.msra.mxu0 0.0
    %751 = vmatprep.subr.mxu0 0.0
    %752 = vmatpush2.msra.mxu0 0.0
    %753 = vmatprep.subr.mxu0 0.0
    %754 = vmatpush2.msra.mxu0 0.0
    %755 = vmatprep.subr.mxu0 0.0
    %756 = vmatpush2.msra.mxu0 0.0
    %757 = vmatprep.subr.mxu0 0.0
    %758 = vmatpush2.msra.mxu0 0.0
    %759 = vmatprep.subr.mxu0 0.0
    %760 = vmatpush2.msra.mxu0 0.0
    %761 = vmatprep.subr.mxu0 0.0
    %762 = vmatpush2.msra.mxu0 0.0
    %763 = vmatprep.subr.mxu0 0.0
    %764 = vmatpush2.msra.mxu0 0.0
    %765 = vmatprep.subr.mxu0 0.0
    %766 = vmatpush2.msra.mxu0 0.0
    %767 = vmatprep.subr.mxu0 0.0
    %768 = vmatpush2.msra.mxu0 0.0
    %769 = vmatprep.subr.mxu0 0.0
    %770 = vmatpush2.msra.mxu0 0.0
    %771 = vmatprep.subr.mxu0 0.0
    %772 = vmatpush2.msra.mxu0 0.0
    %773 = vmatprep.subr.mxu0 0.0
    %774 = vmatpush2.msra.mxu0 0.0
    %775 = vmatprep.subr.mxu0 0.0
    %776 = vmatpush2.msra.mxu0 0.0
    %777 = vmatprep.subr.mxu0 0.0
    %778 = vmatpush2.msra.mxu0 0.0
    %779 = vmatprep.subr.mxu0 0.0
    %780 = vmatpush2.msra.mxu0 0.0
    %781 = vmatprep.mubr.f32.mxu0 0.0
    %v782 = vand.u32 %v92, 4294901760
    %783 = vmatmul.mubr.f32.gmra.mxu0 %v782
    %v784 = vpop.f32.mrf.mxu0
    %v785 = vadd.f32 %v692, %v784
    %v786 = vpop.f32.mrf.mxu0
    %787 = vmatprep.mubr.f32.mxu0 0.0
    %v788 = vand.u32 %v93, 4294901760
    %789 = vmatmul.mubr.f32.gmra.mxu0 %v788
    %v790 = vpop.f32.mrf.mxu0
    %v791 = vadd.f32 %v698, %v790
    %v792 = vpop.f32.mrf.mxu0
    %793 = vdwg.mxu0
    %794 = vadd.xlane.f32.xlu0 %v785
    %v795 = vpop.xlane.xlu0 %794
    %796 = vadd.xlane.f32.xlu0 %v791
    %v797 = vpop.xlane.xlu0 %796
    %v798 = vmul.f32 %v795, 0.0078125
    %v799 = vmul.f32 %v797, 0.0078125
    %v800 = vmul.f32 %v785, %v785
    %v801 = vmul.f32 %v791, %v791
    %802 = vadd.xlane.f32.xlu0 %v800
    %v803 = vpop.xlane.xlu0 %802
    %804 = vadd.xlane.f32.xlu0 %v801
    %v805 = vpop.xlane.xlu0 %804
    %v806 = vmul.f32 %v803, 0.0078125
    %v807 = vmul.f32 %v805, 0.0078125
    %v808 = vmul.f32 %v798, %v798
    %v809 = vmul.f32 %v799, %v799
    %v810 = vsub.f32 %v806, %v808
    %v811 = vsub.f32 %v807, %v809
    %v812 = vsub.f32 %v785, %v798
    %v813 = vsub.f32 %v791, %v799
    %v814 = vadd.f32 %v810, 1e-12
    %v815 = vadd.f32 %v811, 1e-12
    %v816 = vrsqrt.pop %v814
    %v817 = vrsqrt.pop %v815
    %v818 = vmul.f32 %v812, %v816
    %v819 = vmul.f32 %v813, %v817
    %v820 = vld [vmem:[%s3] sm:$0x1]
    %v822 = vlaneseq
    %v823 = vshrl.u32 %v822, 7
    %v824 = vsub.s32 0, %v823
    %v825 = vrot.slane %v820, %v824
    %v827 = vmul.f32 %v825, %v818
    %v828 = vmul.f32 %v825, %v819
    %v829 = vld [vmem:[%s4] sm:$0x1]
    %v831 = vlaneseq
    %v832 = vshrl.u32 %v831, 7
    %v833 = vsub.s32 0, %v832
    %v834 = vrot.slane %v829, %v833
    %v836 = vadd.f32 %v827, %v834
    %v837 = vadd.f32 %v828, %v834
    %838 = vst [vmem:[#allocation5] sm:$0xff] %v836
    %839 = vst [vmem:[#allocation5 + $0x8] sm:$0xff] %v837
    // Predicated region
    $region26: #{tpu_custom_call.1} parent=1 // pred_check
      _
    $region27: #{tpu_custom_call.1} parent=1 // pred_check_branch
      %841 = sbr.rel (0) target = $region29
    $region28: #{tpu_custom_call.1} parent=1 // pred_region
      %s843 = ssub.s32 256, 256
      %844 = vsyncadd [#allocation4], %s843
      %s845 = sshll.u32 [#allocation5], 4
      %s846 = int_to_ptr.vmem [resolvable:$true] %s845
      %851 = dma.vmem_to_hbm [thread:$0]  %s846, 256, %s5, [#allocation4], 128, 128, 8
    $region29: #{tpu_custom_call.1} parent=1 // pred_fallthru
      _
    // Predicated region
    $region30: #{tpu_custom_call.1} parent=1 // pred_check
      _
    $region31: #{tpu_custom_call.1} parent=1 // pred_check_branch
      %853 = sbr.rel (0) target = $region33
    $region32: #{tpu_custom_call.1} parent=1 // pred_region
      %854 = dma.done [#allocation4], 256
    $region33: #{tpu_custom_call.1} parent=1 // pred_fallthru
      _
    %855 = vsyncpa [#allocation3], 1
    %856 = vsyncpa [#allocation4], 1

</llo_original>
